<compile_context>
chip_gen: v7x
topology: tpu7x:2x2x1
jax: 0.10.0
libtpu: 0.0.40
codegen_flags: <defaults>
</compile_context>

<pallas_src>
import jax
import jax.numpy as jnp
from jax import lax
from jax.experimental import pallas as pl
from jax.experimental.pallas import tpu as pltpu


# ----------------------------------------------------------------------------
# Fused kernel: one batch element per grid step.
#   x_ref     : (C, H*W)     input features, channels on sublanes, H*W on lanes
#   wl_ref    : (L, C)       nn.Linear weight (native torch layout)
#   bl_ref    : (L, 1)       nn.Linear bias (column)
#   cbank_ref : (L, D, H*W)  resized + conv3x3-folded prompt bank (batch independent)
#   out_ref   : (D, H*W)     output, channels-first, lane-dense
# ----------------------------------------------------------------------------
def _prompt_gen_kernel(x_ref, wl_ref, bl_ref, cbank_ref, out_ref):
    L = cbank_ref.shape[0]

    # 1) channel-wise spatial mean first (XLU lane reduction): (C, H*W) -> (C, 1).
    xm = jnp.mean(x_ref[...], axis=-1, keepdims=True)

    # 2) tiny logits matvec: (L, C) @ (C, 1) -> (L, 1).  HIGHEST precision so the
    #    1e-4 check holds at larger C as well.
    logits = jnp.dot(wl_ref[...], xm,
                     precision=lax.Precision.HIGHEST,
                     preferred_element_type=jnp.float32) + bl_ref[...]      # (L, 1)

    # 3) softmax over the L prompts (sublane axis).
    m = jnp.max(logits, axis=0, keepdims=True)                              # (1, 1)
    e = jnp.exp(logits - m)                                                 # (L, 1)
    s = jnp.sum(e, axis=0, keepdims=True)                                   # (1, 1)
    # exact reciprocal keeps the 1e-4 check against the f32 reference.
    w = e * pl.reciprocal(s, approx=False)                                  # (L, 1)

    # 4) softmax-weighted sum of the conv-folded bank.  With the conv folded on the
    #    host this is only L(=5) steps x 4 vregs of VPU FMA per batch element —
    #    far below the per-grid-step overhead, so no MXU combine is needed here
    #    (see TODO at top for the TB-batched (TB,L)@(L,D*HW) MXU form).
    acc = w[0:1, :] * cbank_ref[0]
    for l in range(1, L):
        acc = acc + w[l:l + 1, :] * cbank_ref[l]                            # (D, H*W)
    out_ref[...] = acc


# ----------------------------------------------------------------------------
# Host-side (weight-only, batch-independent) helpers.
# ----------------------------------------------------------------------------
def _bilinear_matrix(out_size, in_size):
    """Row-interpolation matrix matching F.interpolate(mode='bilinear', align_corners=False)."""
    i = jnp.arange(out_size, dtype=jnp.float32)
    src = (i + 0.5) * (in_size / out_size) - 0.5
    src = jnp.clip(src, 0.0, float(in_size - 1))
    i0 = jnp.floor(src).astype(jnp.int32)
    i1 = jnp.minimum(i0 + 1, in_size - 1)
    w1 = src - i0.astype(jnp.float32)
    w0 = 1.0 - w1
    return (w0[:, None] * jax.nn.one_hot(i0, in_size, dtype=jnp.float32)
            + w1[:, None] * jax.nn.one_hot(i1, in_size, dtype=jnp.float32))


@jax.jit
def prompt_gen_block(x, prompt_param, w_lin, b_lin, conv_w):
    """x: (B, C, H, W) NCHW.  Returns (B, D, H, W) NCHW."""
    B, C, H, W = x.shape
    L, D, PS, _ = prompt_param.shape
    HW = H * W

    # --- fold the bilinear resize into the bank:  (L, D, PS, PS) -> (L, D, H, W) ---
    # (weight-only; in a real model this whole block is precomputed once per weight set)
    mh = _bilinear_matrix(H, PS)                                            # (H, PS)
    mw = _bilinear_matrix(W, PS)                                            # (W, PS)
    bank = jnp.einsum("hx,ldxy,wy->ldhw", mh, prompt_param, mw,
                      precision=lax.Precision.HIGHEST)                      # (L, D, H, W)

    # --- fold the 3x3 conv (padding=1, no bias) into the bank as well ---
    conv_bank = lax.conv_general_dilated(
        bank, conv_w, (1, 1), "SAME",
        dimension_numbers=("NCHW", "OIHW", "NCHW"),
        precision=lax.Precision.HIGHEST)                                    # (L, D, H, W)
    cbank = conv_bank.reshape(L, D, HW)                                     # (L, D, H*W)

    x_flat = x.reshape(B, C, HW)                                            # (B, C, H*W)
    b_col = b_lin.reshape(L, 1)

    out = pl.pallas_call(
        _prompt_gen_kernel,
        out_shape=jax.ShapeDtypeStruct((B, D, HW), jnp.float32),
        grid=(B,),
        in_specs=[
            pl.BlockSpec((None, C, HW), lambda b: (b, 0, 0)),               # x (per batch)
            pl.BlockSpec((L, C), lambda b: (0, 0)),                         # linear weight
            pl.BlockSpec((L, 1), lambda b: (0, 0)),                         # linear bias
            pl.BlockSpec((L, D, HW), lambda b: (0, 0, 0)),                  # conv-folded bank
        ],
        out_specs=pl.BlockSpec((None, D, HW), lambda b: (b, 0, 0)),
        compiler_params=pltpu.CompilerParams(
            dimension_semantics=("parallel",),           # v7x: the 2 TCs split the batch
            vmem_limit_bytes=32 * 1024 * 1024),          # explicit scoped-VMEM budget
    )(x_flat, w_lin, b_col, cbank)

    return out.reshape(B, D, H, W)                                          # NCHW, free reshape


# ----------------------------------------------------------------------------
# Pure-JAX reference (mirrors the PyTorch forward).
# ----------------------------------------------------------------------------
def _reference(x, prompt_param, w_lin, b_lin, conv_w):
    B, C, H, W = x.shape
    L, D, PS, _ = prompt_param.shape
    emb = x.mean(axis=(2, 3))                                                  # (B, C)
    logits = jnp.dot(emb, w_lin.T, precision=lax.Precision.HIGHEST) + b_lin
    pw = jax.nn.softmax(logits, axis=1)                                        # (B, L)
    prompt = jnp.einsum("bl,ldxy->bdxy", pw, prompt_param,
                        precision=lax.Precision.HIGHEST)                       # (B, D, PS, PS)
    mh = _bilinear_matrix(H, PS)
    mw = _bilinear_matrix(W, PS)
    interp = jnp.einsum("hx,bdxy,wy->bdhw", mh, prompt, mw,
                        precision=lax.Precision.HIGHEST)                       # (B, D, H, W)
    return lax.conv_general_dilated(
        interp, conv_w, (1, 1), "SAME",
        dimension_numbers=("NCHW", "OIHW", "NCHW"),
        precision=lax.Precision.HIGHEST)


if __name__ == "__main__":
    B, C, H, W = 2, 32, 16, 16          # lin_dim = C = 32
    L, D, PS = 5, 16, 8                 # prompt_len, prompt_dim, prompt_size

    key = jax.random.PRNGKey(0)
    k1, k2, k3, k4, k5 = jax.random.split(key, 5)
    x = jax.random.normal(k1, (B, C, H, W), jnp.float32)
    prompt_param = jax.random.uniform(k2, (L, D, PS, PS), jnp.float32)   # torch.rand-like
    w_lin = 0.1 * jax.random.normal(k3, (L, C), jnp.float32)             # nn.Linear weight
    b_lin = 0.1 * jax.random.normal(k4, (L,), jnp.float32)               # nn.Linear bias
    conv_w = 0.1 * jax.random.normal(k5, (D, D, 3, 3), jnp.float32)      # Conv2d weight (OIHW)

    out = prompt_gen_block(x, prompt_param, w_lin, b_lin, conv_w)
    out = jax.block_until_ready(out)

    ref = _reference(x, prompt_param, w_lin, b_lin, conv_w)
    assert out.shape == (B, D, H, W), out.shape
    assert jnp.allclose(out, ref, atol=1e-4, rtol=1e-4), float(jnp.max(jnp.abs(out - ref)))
    print("KERNEL_OK")
</pallas_src>

<mosaic_0001>
module attributes {stable_mosaic.version = 11 : i64} {
  func.func @_prompt_gen_kernel(%arg0: i32, %arg1: memref<1x32x256xf32, #tpu.memory_space<vmem>>, %arg2: memref<5x32xf32, #tpu.memory_space<vmem>>, %arg3: memref<5x1xf32, #tpu.memory_space<vmem>>, %arg4: memref<5x16x256xf32, #tpu.memory_space<vmem>>, %arg5: memref<1x16x256xf32, #tpu.memory_space<vmem>>) attributes {dimension_semantics = [#tpu.dimension_semantics<parallel>], iteration_bounds = array<i64: 2>, scalar_prefetch = 0 : i64, scratch_operands = 0 : i64, tpu.core_type = #tpu.core_type<tc>, window_params = [{transform_indices = @transform_0, window_bounds = array<i64: 1, 32, 256>}, {pipeline_mode = #tpu.pipeline_mode<synchronous>, transform_indices = @transform_1, window_bounds = array<i64: 5, 32>}, {pipeline_mode = #tpu.pipeline_mode<synchronous>, transform_indices = @transform_2, window_bounds = array<i64: 5, 1>}, {pipeline_mode = #tpu.pipeline_mode<synchronous>, transform_indices = @transform_3, window_bounds = array<i64: 5, 16, 256>}, {transform_indices = @transform_4, window_bounds = array<i64: 1, 16, 256>}]} {
    %c0 = arith.constant 0 : index
    %c0_0 = arith.constant 0 : index
    %c0_1 = arith.constant 0 : index
    %0 = vector.load %arg1[%c0, %c0_0, %c0_1] : memref<1x32x256xf32, #tpu.memory_space<vmem>>, vector<1x32x256xf32>
    %1 = vector.shape_cast %0 : vector<1x32x256xf32> to vector<32x256xf32>
    %cst = arith.constant dense<0.000000e+00> : vector<32xf32>
    %2 = vector.multi_reduction <add>, %1, %cst [1] : vector<32x256xf32> to vector<32xf32>
    %3 = vector.shape_cast %2 : vector<32xf32> to vector<32x1xf32>
    %cst_2 = arith.constant 2.560000e+02 : f32
    %4 = vector.broadcast %cst_2 : f32 to vector<32x1xf32>
    %5 = arith.divf %3, %4 : vector<32x1xf32>
    %c0_3 = arith.constant 0 : index
    %c0_4 = arith.constant 0 : index
    %6 = vector.load %arg2[%c0_3, %c0_4] : memref<5x32xf32, #tpu.memory_space<vmem>>, vector<5x32xf32>
    %cst_5 = arith.constant dense<0.000000e+00> : vector<5x1xf32>
    %7 = tpu.matmul %6, %5, %cst_5 {dimension_numbers = #tpu.dot_dimension_numbers<[1], [0], [0], [1], [0, 0, 1, 1], [], []>, precision = #tpu.contract_precision<fp32>} : vector<5x32xf32>, vector<32x1xf32>, vector<5x1xf32> -> vector<5x1xf32>
    %c0_6 = arith.constant 0 : index
    %c0_7 = arith.constant 0 : index
    %8 = vector.load %arg3[%c0_6, %c0_7] : memref<5x1xf32, #tpu.memory_space<vmem>>, vector<5x1xf32>
    %9 = arith.addf %7, %8 : vector<5x1xf32>
    %cst_8 = arith.constant dense<0xFF800000> : vector<1xf32>
    %10 = vector.multi_reduction <maximumf>, %9, %cst_8 [0] : vector<5x1xf32> to vector<1xf32>
    %11 = vector.shape_cast %10 : vector<1xf32> to vector<1x1xf32>
    %12 = vector.broadcast %11 : vector<1x1xf32> to vector<5x1xf32>
    %13 = arith.subf %9, %12 : vector<5x1xf32>
    %14 = math.exp %13 : vector<5x1xf32>
    %cst_9 = arith.constant dense<0.000000e+00> : vector<1xf32>
    %15 = vector.multi_reduction <add>, %14, %cst_9 [0] : vector<5x1xf32> to vector<1xf32>
    %16 = vector.shape_cast %15 : vector<1xf32> to vector<1x1xf32>
    %17 = tpu.reciprocal %16 : vector<1x1xf32> -> vector<1x1xf32>
    %18 = vector.broadcast %17 : vector<1x1xf32> to vector<5x1xf32>
    %19 = arith.mulf %14, %18 : vector<5x1xf32>
    %20 = vector.extract_strided_slice %19 {offsets = [0, 0], sizes = [1, 1], strides = [1, 1]} : vector<5x1xf32> to vector<1x1xf32>
    %c0_10 = arith.constant 0 : index
    %c0_11 = arith.constant 0 : index
    %c0_12 = arith.constant 0 : index
    %21 = vector.load %arg4[%c0_10, %c0_11, %c0_12] : memref<5x16x256xf32, #tpu.memory_space<vmem>>, vector<1x16x256xf32>
    %22 = vector.shape_cast %21 : vector<1x16x256xf32> to vector<16x256xf32>
    %23 = vector.broadcast %20 : vector<1x1xf32> to vector<16x256xf32>
    %24 = arith.mulf %23, %22 : vector<16x256xf32>
    %25 = vector.extract_strided_slice %19 {offsets = [1, 0], sizes = [1, 1], strides = [1, 1]} : vector<5x1xf32> to vector<1x1xf32>
    %c1 = arith.constant 1 : index
    %c0_13 = arith.constant 0 : index
    %c0_14 = arith.constant 0 : index
    %26 = vector.load %arg4[%c1, %c0_13, %c0_14] : memref<5x16x256xf32, #tpu.memory_space<vmem>>, vector<1x16x256xf32>
    %27 = vector.shape_cast %26 : vector<1x16x256xf32> to vector<16x256xf32>
    %28 = vector.broadcast %25 : vector<1x1xf32> to vector<16x256xf32>
    %29 = arith.mulf %28, %27 : vector<16x256xf32>
    %30 = arith.addf %24, %29 : vector<16x256xf32>
    %31 = vector.extract_strided_slice %19 {offsets = [2, 0], sizes = [1, 1], strides = [1, 1]} : vector<5x1xf32> to vector<1x1xf32>
    %c2 = arith.constant 2 : index
    %c0_15 = arith.constant 0 : index
    %c0_16 = arith.constant 0 : index
    %32 = vector.load %arg4[%c2, %c0_15, %c0_16] : memref<5x16x256xf32, #tpu.memory_space<vmem>>, vector<1x16x256xf32>
    %33 = vector.shape_cast %32 : vector<1x16x256xf32> to vector<16x256xf32>
    %34 = vector.broadcast %31 : vector<1x1xf32> to vector<16x256xf32>
    %35 = arith.mulf %34, %33 : vector<16x256xf32>
    %36 = arith.addf %30, %35 : vector<16x256xf32>
    %37 = vector.extract_strided_slice %19 {offsets = [3, 0], sizes = [1, 1], strides = [1, 1]} : vector<5x1xf32> to vector<1x1xf32>
    %c3 = arith.constant 3 : index
    %c0_17 = arith.constant 0 : index
    %c0_18 = arith.constant 0 : index
    %38 = vector.load %arg4[%c3, %c0_17, %c0_18] : memref<5x16x256xf32, #tpu.memory_space<vmem>>, vector<1x16x256xf32>
    %39 = vector.shape_cast %38 : vector<1x16x256xf32> to vector<16x256xf32>
    %40 = vector.broadcast %37 : vector<1x1xf32> to vector<16x256xf32>
    %41 = arith.mulf %40, %39 : vector<16x256xf32>
    %42 = arith.addf %36, %41 : vector<16x256xf32>
    %43 = vector.extract_strided_slice %19 {offsets = [4, 0], sizes = [1, 1], strides = [1, 1]} : vector<5x1xf32> to vector<1x1xf32>
    %c4 = arith.constant 4 : index
    %c0_19 = arith.constant 0 : index
    %c0_20 = arith.constant 0 : index
    %44 = vector.load %arg4[%c4, %c0_19, %c0_20] : memref<5x16x256xf32, #tpu.memory_space<vmem>>, vector<1x16x256xf32>
    %45 = vector.shape_cast %44 : vector<1x16x256xf32> to vector<16x256xf32>
    %46 = vector.broadcast %43 : vector<1x1xf32> to vector<16x256xf32>
    %47 = arith.mulf %46, %45 : vector<16x256xf32>
    %48 = arith.addf %42, %47 : vector<16x256xf32>
    %c0_21 = arith.constant 0 : index
    %c0_22 = arith.constant 0 : index
    %c0_23 = arith.constant 0 : index
    %49 = vector.load %arg5[%c0_21, %c0_22, %c0_23] : memref<1x16x256xf32, #tpu.memory_space<vmem>>, vector<1x16x256xf32>
    %50 = vector.shape_cast %49 : vector<1x16x256xf32> to vector<16x256xf32>
    %51 = vector.shape_cast %48 : vector<16x256xf32> to vector<1x16x256xf32>
    tpu.vector_store %arg5[%c0_21, %c0_22, %c0_23], %51 {strides = array<i32>} : memref<1x16x256xf32, #tpu.memory_space<vmem>>, vector<1x16x256xf32>,
    return
  }
  func.func @transform_0(%arg0: i32) -> (i32, i32, i32) {
    %c0_i32 = arith.constant 0 : i32
    %c0_i32_0 = arith.constant 0 : i32
    %c0_i32_1 = arith.constant 0 : i32
    return %arg0, %c0_i32, %c0_i32_0 : i32, i32, i32
  }
  func.func @transform_1(%arg0: i32) -> (i32, i32) {
    %c0_i32 = arith.constant 0 : i32
    %c0_i32_0 = arith.constant 0 : i32
    %c0_i32_1 = arith.constant 0 : i32
    return %c0_i32, %c0_i32_0 : i32, i32
  }
  func.func @transform_2(%arg0: i32) -> (i32, i32) {
    %c0_i32 = arith.constant 0 : i32
    %c0_i32_0 = arith.constant 0 : i32
    %c0_i32_1 = arith.constant 0 : i32
    return %c0_i32, %c0_i32_0 : i32, i32
  }
  func.func @transform_3(%arg0: i32) -> (i32, i32, i32) {
    %c0_i32 = arith.constant 0 : i32
    %c0_i32_0 = arith.constant 0 : i32
    %c0_i32_1 = arith.constant 0 : i32
    %c0_i32_2 = arith.constant 0 : i32
    return %c0_i32, %c0_i32_0, %c0_i32_1 : i32, i32, i32
  }
  func.func @transform_4(%arg0: i32) -> (i32, i32, i32) {
    %c0_i32 = arith.constant 0 : i32
    %c0_i32_0 = arith.constant 0 : i32
    %c0_i32_1 = arith.constant 0 : i32
    return %arg0, %c0_i32, %c0_i32_0 : i32, i32, i32
  }
}

</mosaic_0001>

<llo_original>
// kernel: prompt_gen_block.1
$region0: #{prompt_gen_block.1}
  #allocation0 [shape = 'u32[]', space=smem, size = 0x4, offset = 0x4, fixed_abs, tag = 'smem constant byte address 0x4 - core index']
  #allocation1 [shape = 'u32[144,128]{1,0:T(1,128)}', space=vmem, size = 0x12000, scoped, tag = 'internal scratch']
  %s0 = inlined_call_operand.vmem [shape: f32[2,32,256], index: 0, kind: input, shape index: {}]
  %s1 = inlined_call_operand.vmem [shape: f32[5,32], index: 1, kind: input, shape index: {}]
  %s2 = inlined_call_operand.vmem [shape: f32[5,1], index: 2, kind: input, shape index: {}]
  %s3 = inlined_call_operand.vmem [shape: f32[5,16,256], index: 3, kind: input, shape index: {}]
  %s4 = inlined_call_operand.vmem [shape: f32[2,16,256], index: 4, kind: output, shape index: {}]
  %s5 = sld [smem:[#allocation0]]
  $region49: #{prompt_gen_block.1} parent=0
    _
  %s7 = ssub.s32 1, %s5
  %s8 = scalar_select 0, %s7, %s5
  loop: start=0, step=1, limit=4
  $region2: #{prompt_gen_block.1} parent=0 // loop_pre_header
    _
  $region3: #{prompt_gen_block.1} parent=0 // loop_header
    %s10 = sphi 0, %s14
    %p11 = scmp.ge.s32.totalorder %s10, 4
    %s20 = sphi 0, %s22
    %s23 = sphi 0, %s20
    %s24 = sphi 0, %s23
    %s40 = sphi 0, %s24
    %s44 = sphi 0, %s44
    %s46 = sphi 0, %s44
    %s47 = sphi 0, %s46
    %s61 = sphi 0, %s47
    %s65 = sphi 0, %s65
    %s67 = sphi 0, %s65
    %s68 = sphi 0, %s67
    %s82 = sphi 0, %s68
    %s86 = sphi 0, %s86
    %s88 = sphi 0, %s86
    %s89 = sphi 0, %s88
    %s103 = sphi 0, %s89
    %s109 = sphi 0, %s111
    %s112 = sphi 0, %s109
    %s113 = sphi 0, %s112
    %s129 = sphi 0, %s113
  $region4: #{prompt_gen_block.1} parent=0 // loop_header_branch
    %13 = sbr.rel (%p11) target = $region8
  $region5: #{prompt_gen_block.1} parent=0 // loop_body
    %s15 = ssub.s32 %s10, 1
    %s16 = ssub.s32 %s10, 2
    %s17 = sadd.s32 %s10, 1
    %s18 = ssub.s32 %s10, %s17
    %p19 = scmp.eq.s32.totalorder %s18, 0
    %s21 = sadd.s32 %s20, 1
    %s22 = scalar_select %p19, %s20, %s21
    %p25 = pneg %p19
    %p26 = scmp.eq.s32.totalorder %s10, 1
    %p27 = por %p25, %p26
    %p28 = scmp.ne.s32.totalorder %s20, %s23
    %p29 = scmp.eq.s32.totalorder %s10, 0
    %p30 = por %p28, %p29
    %p31 = scmp.ne.s32.totalorder %s20, %s23
    %p32 = scmp.eq.s32.totalorder %s15, 1
    %p33 = por %p31, %p32
    %p34 = scmp.ne.s32.totalorder %s23, %s24
    %p35 = scmp.eq.s32.totalorder %s15, 0
    %p36 = por %p34, %p35
    %p37 = scmp.ne.s32.totalorder %s23, %s24
    %p38 = scmp.eq.s32.totalorder %s16, 1
    %p39 = por %p37, %p38
    %p41 = scmp.ne.s32.totalorder %s24, %s40
    %p42 = scmp.eq.s32.totalorder %s16, 0
    %p43 = por %p41, %p42
    %s45 = sadd.s32 %s44, 1
    %p48 = scmp.eq.s32.totalorder %s10, 1
    %p49 = scmp.ne.s32.totalorder %s44, %s46
    %p50 = scmp.eq.s32.totalorder %s10, 0
    %p51 = por %p49, %p50
    %p52 = scmp.ne.s32.totalorder %s44, %s46
    %p53 = scmp.eq.s32.totalorder %s15, 1
    %p54 = por %p52, %p53
    %p55 = scmp.ne.s32.totalorder %s46, %s47
    %p56 = scmp.eq.s32.totalorder %s15, 0
    %p57 = por %p55, %p56
    %p58 = scmp.ne.s32.totalorder %s46, %s47
    %p59 = scmp.eq.s32.totalorder %s16, 1
    %p60 = por %p58, %p59
    %p62 = scmp.ne.s32.totalorder %s47, %s61
    %p63 = scmp.eq.s32.totalorder %s16, 0
    %p64 = por %p62, %p63
    %s66 = sadd.s32 %s65, 1
    %p69 = scmp.eq.s32.totalorder %s10, 1
    %p70 = scmp.ne.s32.totalorder %s65, %s67
    %p71 = scmp.eq.s32.totalorder %s10, 0
    %p72 = por %p70, %p71
    %p73 = scmp.ne.s32.totalorder %s65, %s67
    %p74 = scmp.eq.s32.totalorder %s15, 1
    %p75 = por %p73, %p74
    %p76 = scmp.ne.s32.totalorder %s67, %s68
    %p77 = scmp.eq.s32.totalorder %s15, 0
    %p78 = por %p76, %p77
    %p79 = scmp.ne.s32.totalorder %s67, %s68
    %p80 = scmp.eq.s32.totalorder %s16, 1
    %p81 = por %p79, %p80
    %p83 = scmp.ne.s32.totalorder %s68, %s82
    %p84 = scmp.eq.s32.totalorder %s16, 0
    %p85 = por %p83, %p84
    %s87 = sadd.s32 %s86, 1
    %p90 = scmp.eq.s32.totalorder %s10, 1
    %p91 = scmp.ne.s32.totalorder %s86, %s88
    %p92 = scmp.eq.s32.totalorder %s10, 0
    %p93 = por %p91, %p92
    %p94 = scmp.ne.s32.totalorder %s86, %s88
    %p95 = scmp.eq.s32.totalorder %s15, 1
    %p96 = por %p94, %p95
    %p97 = scmp.ne.s32.totalorder %s88, %s89
    %p98 = scmp.eq.s32.totalorder %s15, 0
    %p99 = por %p97, %p98
    %p100 = scmp.ne.s32.totalorder %s88, %s89
    %p101 = scmp.eq.s32.totalorder %s16, 1
    %p102 = por %p100, %p101
    %p104 = scmp.ne.s32.totalorder %s89, %s103
    %p105 = scmp.eq.s32.totalorder %s16, 0
    %p106 = por %p104, %p105
    %s107 = ssub.s32 %s10, %s17
    %p108 = scmp.eq.s32.totalorder %s107, 0
    %s110 = sadd.s32 %s109, 1
    %s111 = scalar_select %p108, %s109, %s110
    %p114 = pneg %p108
    %p115 = scmp.eq.s32.totalorder %s10, 1
    %p116 = por %p114, %p115
    %p117 = scmp.ne.s32.totalorder %s109, %s112
    %p118 = scmp.eq.s32.totalorder %s10, 0
    %p119 = por %p117, %p118
    %p120 = scmp.ne.s32.totalorder %s109, %s112
    %p121 = scmp.eq.s32.totalorder %s15, 1
    %p122 = por %p120, %p121
    %p123 = scmp.ne.s32.totalorder %s112, %s113
    %p124 = scmp.eq.s32.totalorder %s15, 0
    %p125 = por %p123, %p124
    %p126 = scmp.ne.s32.totalorder %s112, %s113
    %p127 = scmp.eq.s32.totalorder %s16, 1
    %p128 = por %p126, %p127
    %p130 = scmp.ne.s32.totalorder %s113, %s129
    %p131 = scmp.eq.s32.totalorder %s16, 0
    %p132 = por %p130, %p131
    %p133 = scmp.le.s32.totalorder 1, %s10
    %p134 = scmp.lt.s32.totalorder %s10, 3
    %p135 = pnand %p133, %p134
    %p136 = pneg %p135
    // Predicated region
    $region9: #{prompt_gen_block.1} parent=5 // pred_check
      _
    $region10: #{prompt_gen_block.1} parent=5 // pred_check_branch
      %138 = sbr.rel (%p135) target = $region12
    $region11: #{prompt_gen_block.1} parent=5 // pred_region
      %s139 = ssub.s32 %s10, 1
      // Predicated region
      $region13: #{prompt_gen_block.1} parent=11 // pred_check
        %p140 = pneg %p57
      $region14: #{prompt_gen_block.1} parent=11 // pred_check_branch
        %142 = sbr.rel (%p140) target = $region16
      $region15: #{prompt_gen_block.1} parent=11 // pred_region
        _
      $region16: #{prompt_gen_block.1} parent=11 // pred_fallthru
        _
      // Predicated region
      $region17: #{prompt_gen_block.1} parent=11 // pred_check
        %p143 = pneg %p78
      $region18: #{prompt_gen_block.1} parent=11 // pred_check_branch
        %145 = sbr.rel (%p143) target = $region20
      $region19: #{prompt_gen_block.1} parent=11 // pred_region
        _
      $region20: #{prompt_gen_block.1} parent=11 // pred_fallthru
        _
      // Predicated region
      $region21: #{prompt_gen_block.1} parent=11 // pred_check
        %p146 = pneg %p99
      $region22: #{prompt_gen_block.1} parent=11 // pred_check_branch
        %148 = sbr.rel (%p146) target = $region24
      $region23: #{prompt_gen_block.1} parent=11 // pred_region
        _
      $region24: #{prompt_gen_block.1} parent=11 // pred_fallthru
        _
    $region12: #{prompt_gen_block.1} parent=5 // pred_fallthru
      _
    %p149 = scmp.lt.s32.totalorder %s10, 2
    // Predicated region
    $region25: #{prompt_gen_block.1} parent=5 // pred_check
      %p150 = pneg %p149
    $region26: #{prompt_gen_block.1} parent=5 // pred_check_branch
      %152 = sbr.rel (%p150) target = $region28
    $region27: #{prompt_gen_block.1} parent=5 // pred_region
      // Predicated region
      $region29: #{prompt_gen_block.1} parent=27 // pred_check
        %p153 = pneg %p30
      $region30: #{prompt_gen_block.1} parent=27 // pred_check_branch
        %155 = sbr.rel (%p153) target = $region32
      $region31: #{prompt_gen_block.1} parent=27 // pred_region
        %p156 = scmp.lt.s32.totalorder %s10, 1
        %s157 = scalar_select %p156, %s10, 1
        %s158 = smul.addr %s157, 8
        %s159 = smul.addr %s158, 8
        %s160 = scalar_lea.vmem %s0, %s159
      $region32: #{prompt_gen_block.1} parent=27 // pred_fallthru
        _
    $region28: #{prompt_gen_block.1} parent=5 // pred_fallthru
      _
    %p161 = scmp.le.s32.totalorder 1, %s10
    %p162 = scmp.lt.s32.totalorder %s10, 3
    %p163 = pnand %p161, %p162
    %p164 = pneg %p163
    // Predicated region
    $region33: #{prompt_gen_block.1} parent=5 // pred_check
      _
    $region34: #{prompt_gen_block.1} parent=5 // pred_check_branch
      %166 = sbr.rel (%p163) target = $region36
    $region35: #{prompt_gen_block.1} parent=5 // pred_region
      %s167 = ssub.s32 %s10, 1
      %p168 = scmp.lt.s32.totalorder %s15, 1
      %s169 = scalar_select %p168, %s15, 1
      %s170 = smul.addr %s169, 8
      %s171 = smul.addr %s170, 8
      %s172 = scalar_lea.vmem %s0, %s171
      %p173 = pneg %p36
      %p174 = pneg %p33
      %p175 = pneg %p57
      %p176 = pneg %p54
      %p177 = pneg %p78
      %p178 = pneg %p75
      %p179 = pneg %p99
      %p180 = pneg %p96
      %p181 = pneg %p125
      %p182 = pneg %p122
      %p183 = scmp.lt.s32.totalorder %s15, 1
      %s184 = scalar_select %p183, %s15, 1
      %s185 = smul.addr %s184, 4
      %s186 = smul.addr %s185, 8
      %s187 = scalar_lea.vmem %s4, %s186
      %p188 = scmp.lt.s32.totalorder %s15, 1
      %s189 = scalar_select %p188, %s15, 1
      %s190 = smul.addr %s189, 8
      %s191 = smul.addr %s190, 8
      %s192 = scalar_lea.vmem %s0, %s191
      %p193 = scmp.lt.s32.totalorder %s15, 1
      %s194 = scalar_select %p193, %s15, 1
      %s195 = smul.addr %s194, 4
      %s196 = smul.addr %s195, 8
      %s197 = scalar_lea.vmem %s4, %s196
      %v198 = vld [vmem:[%s192] sm:$0xff]
      %v199 = vld [vmem:[%s192 + $0x8] sm:$0xff]
      %v200 = vld [vmem:[%s192 + $0x10] sm:$0xff]
      %v201 = vld [vmem:[%s192 + $0x18] sm:$0xff]
      %v202 = vld [vmem:[%s192 + $0x20] sm:$0xff]
      %v203 = vld [vmem:[%s192 + $0x28] sm:$0xff]
      %v204 = vld [vmem:[%s192 + $0x30] sm:$0xff]
      %v205 = vld [vmem:[%s192 + $0x38] sm:$0xff]
      %v206 = vadd.f32 %v198, %v199
      %207 = vadd.xlane.f32.xlu0 %v206
      %v208 = vpop.xlane.xlu0 %207
      %v209 = vadd.f32 %v200, %v201
      %210 = vadd.xlane.f32.xlu0 %v209
      %v211 = vpop.xlane.xlu0 %210
      %v212 = vadd.f32 %v202, %v203
      %213 = vadd.xlane.f32.xlu0 %v212
      %v214 = vpop.xlane.xlu0 %213
      %v215 = vadd.f32 %v204, %v205
      %216 = vadd.xlane.f32.xlu0 %v215
      %v217 = vpop.xlane.xlu0 %216
      %v218 = vrcp.pop 256.0
      %v219 = vmul.f32 %v208, %v218
      %v220 = vmul.f32 %v211, %v218
      %v221 = vmul.f32 %v214, %v218
      %v222 = vmul.f32 %v217, %v218
      %v223 = vld [vmem:[%s1] sm:$0x1f]
      %v224 = vld [vmem:[%s2] sm:$0x1f]
      %vm225 = vcmask 261120
      %v227 = vsel %vm225, %v223, 0
      %229 = vmatprep.subr.mxu0 0.0
      %v230 = vand.u32 %v219, 4294901760
      %231 = vmatpush1.msra.mxu0 %v230
      %232 = vmatprep.subr.mxu0 0.0
      %v233 = vand.u32 %v220, 4294901760
      %234 = vmatpush1.msra.mxu0 %v233
      %235 = vmatprep.subr.mxu0 0.0
      %v236 = vand.u32 %v221, 4294901760
      %237 = vmatpush1.msra.mxu0 %v236
      %238 = vmatprep.subr.mxu0 0.0
      %v239 = vand.u32 %v222, 4294901760
      %240 = vmatpush1.msra.mxu0 %v239
      %241 = vmatprep.subr.mxu0 0.0
      %242 = vmatpush1.msra.mxu0 0.0
      %243 = vmatprep.subr.mxu0 0.0
      %244 = vmatpush1.msra.mxu0 0.0
      %245 = vmatprep.subr.mxu0 0.0
      %246 = vmatpush1.msra.mxu0 0.0
      %247 = vmatprep.subr.mxu0 0.0
      %248 = vmatpush1.msra.mxu0 0.0
      %249 = vmatprep.subr.mxu0 0.0
      %250 = vmatpush1.msra.mxu0 0.0
      %251 = vmatprep.subr.mxu0 0.0
      %252 = vmatpush1.msra.mxu0 0.0
      %253 = vmatprep.subr.mxu0 0.0
      %254 = vmatpush1.msra.mxu0 0.0
      %255 = vmatprep.subr.mxu0 0.0
      %256 = vmatpush1.msra.mxu0 0.0
      %257 = vmatprep.subr.mxu0 0.0
      %258 = vmatpush1.msra.mxu0 0.0
      %259 = vmatprep.subr.mxu0 0.0
      %260 = vmatpush1.msra.mxu0 0.0
      %261 = vmatprep.subr.mxu0 0.0
      %262 = vmatpush1.msra.mxu0 0.0
      %263 = vmatprep.subr.mxu0 0.0
      %264 = vmatpush1.msra.mxu0 0.0
      %265 = vmatprep.subr.mxu0 0.0
      %266 = vmatpush1.msra.mxu0 0.0
      %267 = vmatprep.subr.mxu0 0.0
      %268 = vmatpush1.msra.mxu0 0.0
      %269 = vmatprep.subr.mxu0 0.0
      %270 = vmatpush1.msra.mxu0 0.0
      %271 = vmatprep.subr.mxu0 0.0
      %272 = vmatpush1.msra.mxu0 0.0
      %273 = vmatprep.subr.mxu0 0.0
      %274 = vmatpush1.msra.mxu0 0.0
      %275 = vmatprep.subr.mxu0 0.0
      %276 = vmatpush1.msra.mxu0 0.0
      %277 = vmatprep.subr.mxu0 0.0
      %278 = vmatpush1.msra.mxu0 0.0
      %279 = vmatprep.subr.mxu0 0.0
      %280 = vmatpush1.msra.mxu0 0.0
      %281 = vmatprep.subr.mxu0 0.0
      %282 = vmatpush1.msra.mxu0 0.0
      %283 = vmatprep.subr.mxu0 0.0
      %284 = vmatpush1.msra.mxu0 0.0
      %285 = vmatprep.subr.mxu0 0.0
      %286 = vmatpush1.msra.mxu0 0.0
      %287 = vmatprep.subr.mxu0 0.0
      %288 = vmatpush1.msra.mxu0 0.0
      %289 = vmatprep.subr.mxu0 0.0
      %290 = vmatpush1.msra.mxu0 0.0
      %291 = vmatprep.subr.mxu0 0.0
      %292 = vmatpush1.msra.mxu0 0.0
      %293 = vmatprep.subr.mxu0 0.0
      %294 = vmatpush1.msra.mxu0 0.0
      %295 = vmatprep.subr.mxu0 0.0
      %296 = vmatpush1.msra.mxu0 0.0
      %297 = vmatprep.mubr.f32.mxu0 0.0
      %v298 = vand.u32 %v227, 4294901760
      %v299 = vsub.f32 %v227, %v298
      %v300 = vand.u32 %v299, 4294901760
      %v301 = vsub.f32 %v299, %v300
      %v302 = vand.u32 %v301, 4294901760
      %303 = vmatmul.mubr.f32.gmra.mrb[0].mxu0 %v302
      %v304 = vpop.f32.mrb[0].mxu0
      %v305 = vadd.f32 %v224, %v304
      %v306 = vpop.f32.mrb[0].mxu0
      %307 = vdwg.mxu0
      %308 = vmatprep.subr.mxu0 0.0
      %v309 = vand.u32 %v219, 4294901760
      %v310 = vsub.f32 %v219, %v309
      %v311 = vand.u32 %v310, 4294901760
      %v312 = vsub.f32 %v310, %v311
      %v313 = vand.u32 %v312, 4294901760
      %314 = vmatpush1.msra.mxu0 %v313
      %315 = vmatprep.subr.mxu0 0.0
      %v316 = vand.u32 %v220, 4294901760
      %v317 = vsub.f32 %v220, %v316
      %v318 = vand.u32 %v317, 4294901760
      %v319 = vsub.f32 %v317, %v318
      %v320 = vand.u32 %v319, 4294901760
      %321 = vmatpush1.msra.mxu0 %v320
      %322 = vmatprep.subr.mxu0 0.0
      %v323 = vand.u32 %v221, 4294901760
      %v324 = vsub.f32 %v221, %v323
      %v325 = vand.u32 %v324, 4294901760
      %v326 = vsub.f32 %v324, %v325
      %v327 = vand.u32 %v326, 4294901760
      %328 = vmatpush1.msra.mxu0 %v327
      %329 = vmatprep.subr.mxu0 0.0
      %v330 = vand.u32 %v222, 4294901760
      %v331 = vsub.f32 %v222, %v330
      %v332 = vand.u32 %v331, 4294901760
      %v333 = vsub.f32 %v331, %v332
      %v334 = vand.u32 %v333, 4294901760
      %335 = vmatpush1.msra.mxu0 %v334
      %336 = vmatprep.subr.mxu0 0.0
      %337 = vmatpush1.msra.mxu0 0.0
      %338 = vmatprep.subr.mxu0 0.0
      %339 = vmatpush1.msra.mxu0 0.0
      %340 = vmatprep.subr.mxu0 0.0
      %341 = vmatpush1.msra.mxu0 0.0
      %342 = vmatprep.subr.mxu0 0.0
      %343 = vmatpush1.msra.mxu0 0.0
      %344 = vmatprep.subr.mxu0 0.0
      %345 = vmatpush1.msra.mxu0 0.0
      %346 = vmatprep.subr.mxu0 0.0
      %347 = vmatpush1.msra.mxu0 0.0
      %348 = vmatprep.subr.mxu0 0.0
      %349 = vmatpush1.msra.mxu0 0.0
      %350 = vmatprep.subr.mxu0 0.0
      %351 = vmatpush1.msra.mxu0 0.0
      %352 = vmatprep.subr.mxu0 0.0
      %353 = vmatpush1.msra.mxu0 0.0
      %354 = vmatprep.subr.mxu0 0.0
      %355 = vmatpush1.msra.mxu0 0.0
      %356 = vmatprep.subr.mxu0 0.0
      %357 = vmatpush1.msra.mxu0 0.0
      %358 = vmatprep.subr.mxu0 0.0
      %359 = vmatpush1.msra.mxu0 0.0
      %360 = vmatprep.subr.mxu0 0.0
      %361 = vmatpush1.msra.mxu0 0.0
      %362 = vmatprep.subr.mxu0 0.0
      %363 = vmatpush1.msra.mxu0 0.0
      %364 = vmatprep.subr.mxu0 0.0
      %365 = vmatpush1.msra.mxu0 0.0
      %366 = vmatprep.subr.mxu0 0.0
      %367 = vmatpush1.msra.mxu0 0.0
      %368 = vmatprep.subr.mxu0 0.0
      %369 = vmatpush1.msra.mxu0 0.0
      %370 = vmatprep.subr.mxu0 0.0
      %371 = vmatpush1.msra.mxu0 0.0
      %372 = vmatprep.subr.mxu0 0.0
      %373 = vmatpush1.msra.mxu0 0.0
      %374 = vmatprep.subr.mxu0 0.0
      %375 = vmatpush1.msra.mxu0 0.0
      %376 = vmatprep.subr.mxu0 0.0
      %377 = vmatpush1.msra.mxu0 0.0
      %378 = vmatprep.subr.mxu0 0.0
      %379 = vmatpush1.msra.mxu0 0.0
      %380 = vmatprep.subr.mxu0 0.0
      %381 = vmatpush1.msra.mxu0 0.0
      %382 = vmatprep.subr.mxu0 0.0
      %383 = vmatpush1.msra.mxu0 0.0
      %384 = vmatprep.subr.mxu0 0.0
      %385 = vmatpush1.msra.mxu0 0.0
      %386 = vmatprep.subr.mxu0 0.0
      %387 = vmatpush1.msra.mxu0 0.0
      %388 = vmatprep.subr.mxu0 0.0
      %389 = vmatpush1.msra.mxu0 0.0
      %390 = vmatprep.subr.mxu0 0.0
      %391 = vmatpush1.msra.mxu0 0.0
      %392 = vmatprep.mubr.f32.mxu0 0.0
      %v393 = vand.u32 %v227, 4294901760
      %394 = vmatmul.mubr.f32.gmra.mrb[0].mxu0 %v393
      %v395 = vpop.f32.mrb[0].mxu0
      %v396 = vadd.f32 %v305, %v395
      %v397 = vpop.f32.mrb[0].mxu0
      %398 = vdwg.mxu0
      %399 = vmatprep.subr.mxu0 0.0
      %v400 = vand.u32 %v219, 4294901760
      %v401 = vsub.f32 %v219, %v400
      %402 = vmatpush1.msra.mxu0 %v401
      %403 = vmatprep.subr.mxu0 0.0
      %v404 = vand.u32 %v220, 4294901760
      %v405 = vsub.f32 %v220, %v404
      %406 = vmatpush1.msra.mxu0 %v405
      %407 = vmatprep.subr.mxu0 0.0
      %v408 = vand.u32 %v221, 4294901760
      %v409 = vsub.f32 %v221, %v408
      %410 = vmatpush1.msra.mxu0 %v409
      %411 = vmatprep.subr.mxu0 0.0
      %v412 = vand.u32 %v222, 4294901760
      %v413 = vsub.f32 %v222, %v412
      %414 = vmatpush1.msra.mxu0 %v413
      %415 = vmatprep.subr.mxu0 0.0
      %416 = vmatpush1.msra.mxu0 0.0
      %417 = vmatprep.subr.mxu0 0.0
      %418 = vmatpush1.msra.mxu0 0.0
      %419 = vmatprep.subr.mxu0 0.0
      %420 = vmatpush1.msra.mxu0 0.0
      %421 = vmatprep.subr.mxu0 0.0
      %422 = vmatpush1.msra.mxu0 0.0
      %423 = vmatprep.subr.mxu0 0.0
      %424 = vmatpush1.msra.mxu0 0.0
      %425 = vmatprep.subr.mxu0 0.0
      %426 = vmatpush1.msra.mxu0 0.0
      %427 = vmatprep.subr.mxu0 0.0
      %428 = vmatpush1.msra.mxu0 0.0
      %429 = vmatprep.subr.mxu0 0.0
      %430 = vmatpush1.msra.mxu0 0.0
      %431 = vmatprep.subr.mxu0 0.0
      %432 = vmatpush1.msra.mxu0 0.0
      %433 = vmatprep.subr.mxu0 0.0
      %434 = vmatpush1.msra.mxu0 0.0
      %435 = vmatprep.subr.mxu0 0.0
      %436 = vmatpush1.msra.mxu0 0.0
      %437 = vmatprep.subr.mxu0 0.0
      %438 = vmatpush1.msra.mxu0 0.0
      %439 = vmatprep.subr.mxu0 0.0
      %440 = vmatpush1.msra.mxu0 0.0
      %441 = vmatprep.subr.mxu0 0.0
      %442 = vmatpush1.msra.mxu0 0.0
      %443 = vmatprep.subr.mxu0 0.0
      %444 = vmatpush1.msra.mxu0 0.0
      %445 = vmatprep.subr.mxu0 0.0
      %446 = vmatpush1.msra.mxu0 0.0
      %447 = vmatprep.subr.mxu0 0.0
      %448 = vmatpush1.msra.mxu0 0.0
      %449 = vmatprep.subr.mxu0 0.0
      %450 = vmatpush1.msra.mxu0 0.0
      %451 = vmatprep.subr.mxu0 0.0
      %452 = vmatpush1.msra.mxu0 0.0
      %453 = vmatprep.subr.mxu0 0.0
      %454 = vmatpush1.msra.mxu0 0.0
      %455 = vmatprep.subr.mxu0 0.0
      %456 = vmatpush1.msra.mxu0 0.0
      %457 = vmatprep.subr.mxu0 0.0
      %458 = vmatpush1.msra.mxu0 0.0
      %459 = vmatprep.subr.mxu0 0.0
      %460 = vmatpush1.msra.mxu0 0.0
      %461 = vmatprep.subr.mxu0 0.0
      %462 = vmatpush1.msra.mxu0 0.0
      %463 = vmatprep.subr.mxu0 0.0
      %464 = vmatpush1.msra.mxu0 0.0
      %465 = vmatprep.subr.mxu0 0.0
      %466 = vmatpush1.msra.mxu0 0.0
      %467 = vmatprep.subr.mxu0 0.0
      %468 = vmatpush1.msra.mxu0 0.0
      %469 = vmatprep.subr.mxu0 0.0
      %470 = vmatpush1.msra.mxu0 0.0
      %471 = vmatprep.mubr.f32.mxu0 0.0
      %v472 = vand.u32 %v227, 4294901760
      %v473 = vsub.f32 %v227, %v472
      %474 = vmatmul.mubr.f32.gmra.mrb[0].mxu0 %v473
      %v475 = vpop.f32.mrb[0].mxu0
      %v476 = vadd.f32 %v396, %v475
      %v477 = vpop.f32.mrb[0].mxu0
      %478 = vdwg.mxu0
      %479 = vmatprep.subr.mxu0 0.0
      %v480 = vand.u32 %v219, 4294901760
      %481 = vmatpush1.msra.mxu0 %v480
      %482 = vmatprep.subr.mxu0 0.0
      %v483 = vand.u32 %v220, 4294901760
      %484 = vmatpush1.msra.mxu0 %v483
      %485 = vmatprep.subr.mxu0 0.0
      %v486 = vand.u32 %v221, 4294901760
      %487 = vmatpush1.msra.mxu0 %v486
      %488 = vmatprep.subr.mxu0 0.0
      %v489 = vand.u32 %v222, 4294901760
      %490 = vmatpush1.msra.mxu0 %v489
      %491 = vmatprep.subr.mxu0 0.0
      %492 = vmatpush1.msra.mxu0 0.0
      %493 = vmatprep.subr.mxu0 0.0
      %494 = vmatpush1.msra.mxu0 0.0
      %495 = vmatprep.subr.mxu0 0.0
      %496 = vmatpush1.msra.mxu0 0.0
      %497 = vmatprep.subr.mxu0 0.0
      %498 = vmatpush1.msra.mxu0 0.0
      %499 = vmatprep.subr.mxu0 0.0
      %500 = vmatpush1.msra.mxu0 0.0
      %501 = vmatprep.subr.mxu0 0.0
      %502 = vmatpush1.msra.mxu0 0.0
      %503 = vmatprep.subr.mxu0 0.0
      %504 = vmatpush1.msra.mxu0 0.0
      %505 = vmatprep.subr.mxu0 0.0
      %506 = vmatpush1.msra.mxu0 0.0
      %507 = vmatprep.subr.mxu0 0.0
      %508 = vmatpush1.msra.mxu0 0.0
      %509 = vmatprep.subr.mxu0 0.0
      %510 = vmatpush1.msra.mxu0 0.0
      %511 = vmatprep.subr.mxu0 0.0
      %512 = vmatpush1.msra.mxu0 0.0
      %513 = vmatprep.subr.mxu0 0.0
      %514 = vmatpush1.msra.mxu0 0.0
      %515 = vmatprep.subr.mxu0 0.0
      %516 = vmatpush1.msra.mxu0 0.0
      %517 = vmatprep.subr.mxu0 0.0
      %518 = vmatpush1.msra.mxu0 0.0
      %519 = vmatprep.subr.mxu0 0.0
      %520 = vmatpush1.msra.mxu0 0.0
      %521 = vmatprep.subr.mxu0 0.0
      %522 = vmatpush1.msra.mxu0 0.0
      %523 = vmatprep.subr.mxu0 0.0
      %524 = vmatpush1.msra.mxu0 0.0
      %525 = vmatprep.subr.mxu0 0.0
      %526 = vmatpush1.msra.mxu0 0.0
      %527 = vmatprep.subr.mxu0 0.0
      %528 = vmatpush1.msra.mxu0 0.0
      %529 = vmatprep.subr.mxu0 0.0
      %530 = vmatpush1.msra.mxu0 0.0
      %531 = vmatprep.subr.mxu0 0.0
      %532 = vmatpush1.msra.mxu0 0.0
      %533 = vmatprep.subr.mxu0 0.0
      %534 = vmatpush1.msra.mxu0 0.0
      %535 = vmatprep.subr.mxu0 0.0
      %536 = vmatpush1.msra.mxu0 0.0
      %537 = vmatprep.subr.mxu0 0.0
      %538 = vmatpush1.msra.mxu0 0.0
      %539 = vmatprep.subr.mxu0 0.0
      %540 = vmatpush1.msra.mxu0 0.0
      %541 = vmatprep.subr.mxu0 0.0
      %542 = vmatpush1.msra.mxu0 0.0
      %543 = vmatprep.subr.mxu0 0.0
      %544 = vmatpush1.msra.mxu0 0.0
      %545 = vmatprep.subr.mxu0 0.0
      %546 = vmatpush1.msra.mxu0 0.0
      %547 = vmatprep.mubr.f32.mxu0 0.0
      %v548 = vand.u32 %v227, 4294901760
      %v549 = vsub.f32 %v227, %v548
      %v550 = vand.u32 %v549, 4294901760
      %551 = vmatmul.mubr.f32.gmra.mrb[0].mxu0 %v550
      %v552 = vpop.f32.mrb[0].mxu0
      %v553 = vadd.f32 %v476, %v552
      %v554 = vpop.f32.mrb[0].mxu0
      %555 = vdwg.mxu0
      %556 = vmatprep.subr.mxu0 0.0
      %v557 = vand.u32 %v219, 4294901760
      %v558 = vsub.f32 %v219, %v557
      %v559 = vand.u32 %v558, 4294901760
      %560 = vmatpush1.msra.mxu0 %v559
      %561 = vmatprep.subr.mxu0 0.0
      %v562 = vand.u32 %v220, 4294901760
      %v563 = vsub.f32 %v220, %v562
      %v564 = vand.u32 %v563, 4294901760
      %565 = vmatpush1.msra.mxu0 %v564
      %566 = vmatprep.subr.mxu0 0.0
      %v567 = vand.u32 %v221, 4294901760
      %v568 = vsub.f32 %v221, %v567
      %v569 = vand.u32 %v568, 4294901760
      %570 = vmatpush1.msra.mxu0 %v569
      %571 = vmatprep.subr.mxu0 0.0
      %v572 = vand.u32 %v222, 4294901760
      %v573 = vsub.f32 %v222, %v572
      %v574 = vand.u32 %v573, 4294901760
      %575 = vmatpush1.msra.mxu0 %v574
      %576 = vmatprep.subr.mxu0 0.0
      %577 = vmatpush1.msra.mxu0 0.0
      %578 = vmatprep.subr.mxu0 0.0
      %579 = vmatpush1.msra.mxu0 0.0
      %580 = vmatprep.subr.mxu0 0.0
      %581 = vmatpush1.msra.mxu0 0.0
      %582 = vmatprep.subr.mxu0 0.0
      %583 = vmatpush1.msra.mxu0 0.0
      %584 = vmatprep.subr.mxu0 0.0
      %585 = vmatpush1.msra.mxu0 0.0
      %586 = vmatprep.subr.mxu0 0.0
      %587 = vmatpush1.msra.mxu0 0.0
      %588 = vmatprep.subr.mxu0 0.0
      %589 = vmatpush1.msra.mxu0 0.0
      %590 = vmatprep.subr.mxu0 0.0
      %591 = vmatpush1.msra.mxu0 0.0
      %592 = vmatprep.subr.mxu0 0.0
      %593 = vmatpush1.msra.mxu0 0.0
      %594 = vmatprep.subr.mxu0 0.0
      %595 = vmatpush1.msra.mxu0 0.0
      %596 = vmatprep.subr.mxu0 0.0
      %597 = vmatpush1.msra.mxu0 0.0
      %598 = vmatprep.subr.mxu0 0.0
      %599 = vmatpush1.msra.mxu0 0.0
      %600 = vmatprep.subr.mxu0 0.0
      %601 = vmatpush1.msra.mxu0 0.0
      %602 = vmatprep.subr.mxu0 0.0
      %603 = vmatpush1.msra.mxu0 0.0
      %604 = vmatprep.subr.mxu0 0.0
      %605 = vmatpush1.msra.mxu0 0.0
      %606 = vmatprep.subr.mxu0 0.0
      %607 = vmatpush1.msra.mxu0 0.0
      %608 = vmatprep.subr.mxu0 0.0
      %609 = vmatpush1.msra.mxu0 0.0
      %610 = vmatprep.subr.mxu0 0.0
      %611 = vmatpush1.msra.mxu0 0.0
      %612 = vmatprep.subr.mxu0 0.0
      %613 = vmatpush1.msra.mxu0 0.0
      %614 = vmatprep.subr.mxu0 0.0
      %615 = vmatpush1.msra.mxu0 0.0
      %616 = vmatprep.subr.mxu0 0.0
      %617 = vmatpush1.msra.mxu0 0.0
      %618 = vmatprep.subr.mxu0 0.0
      %619 = vmatpush1.msra.mxu0 0.0
      %620 = vmatprep.subr.mxu0 0.0
      %621 = vmatpush1.msra.mxu0 0.0
      %622 = vmatprep.subr.mxu0 0.0
      %623 = vmatpush1.msra.mxu0 0.0
      %624 = vmatprep.subr.mxu0 0.0
      %625 = vmatpush1.msra.mxu0 0.0
      %626 = vmatprep.subr.mxu0 0.0
      %627 = vmatpush1.msra.mxu0 0.0
      %628 = vmatprep.subr.mxu0 0.0
      %629 = vmatpush1.msra.mxu0 0.0
      %630 = vmatprep.subr.mxu0 0.0
      %631 = vmatpush1.msra.mxu0 0.0
      %632 = vmatprep.mubr.f32.mxu0 0.0
      %v633 = vand.u32 %v227, 4294901760
      %634 = vmatmul.mubr.f32.gmra.mrb[0].mxu0 %v633
      %v635 = vpop.f32.mrb[0].mxu0
      %v636 = vadd.f32 %v553, %v635
      %v637 = vpop.f32.mrb[0].mxu0
      %638 = vdwg.mxu0
      %639 = vmatprep.subr.mxu0 0.0
      %v640 = vand.u32 %v219, 4294901760
      %641 = vmatpush1.msra.mxu0 %v640
      %642 = vmatprep.subr.mxu0 0.0
      %v643 = vand.u32 %v220, 4294901760
      %644 = vmatpush1.msra.mxu0 %v643
      %645 = vmatprep.subr.mxu0 0.0
      %v646 = vand.u32 %v221, 4294901760
      %647 = vmatpush1.msra.mxu0 %v646
      %648 = vmatprep.subr.mxu0 0.0
      %v649 = vand.u32 %v222, 4294901760
      %650 = vmatpush1.msra.mxu0 %v649
      %651 = vmatprep.subr.mxu0 0.0
      %652 = vmatpush1.msra.mxu0 0.0
      %653 = vmatprep.subr.mxu0 0.0
      %654 = vmatpush1.msra.mxu0 0.0
      %655 = vmatprep.subr.mxu0 0.0
      %656 = vmatpush1.msra.mxu0 0.0
      %657 = vmatprep.subr.mxu0 0.0
      %658 = vmatpush1.msra.mxu0 0.0
      %659 = vmatprep.subr.mxu0 0.0
      %660 = vmatpush1.msra.mxu0 0.0
      %661 = vmatprep.subr.mxu0 0.0
      %662 = vmatpush1.msra.mxu0 0.0
      %663 = vmatprep.subr.mxu0 0.0
      %664 = vmatpush1.msra.mxu0 0.0
      %665 = vmatprep.subr.mxu0 0.0
      %666 = vmatpush1.msra.mxu0 0.0
      %667 = vmatprep.subr.mxu0 0.0
      %668 = vmatpush1.msra.mxu0 0.0
      %669 = vmatprep.subr.mxu0 0.0
      %670 = vmatpush1.msra.mxu0 0.0
      %671 = vmatprep.subr.mxu0 0.0
      %672 = vmatpush1.msra.mxu0 0.0
      %673 = vmatprep.subr.mxu0 0.0
      %674 = vmatpush1.msra.mxu0 0.0
      %675 = vmatprep.subr.mxu0 0.0
      %676 = vmatpush1.msra.mxu0 0.0
      %677 = vmatprep.subr.mxu0 0.0
      %678 = vmatpush1.msra.mxu0 0.0
      %679 = vmatprep.subr.mxu0 0.0
      %680 = vmatpush1.msra.mxu0 0.0
      %681 = vmatprep.subr.mxu0 0.0
      %682 = vmatpush1.msra.mxu0 0.0
      %683 = vmatprep.subr.mxu0 0.0
      %684 = vmatpush1.msra.mxu0 0.0
      %685 = vmatprep.subr.mxu0 0.0
      %686 = vmatpush1.msra.mxu0 0.0
      %687 = vmatprep.subr.mxu0 0.0
      %688 = vmatpush1.msra.mxu0 0.0
      %689 = vmatprep.subr.mxu0 0.0
      %690 = vmatpush1.msra.mxu0 0.0
      %691 = vmatprep.subr.mxu0 0.0
      %692 = vmatpush1.msra.mxu0 0.0
      %693 = vmatprep.subr.mxu0 0.0
      %694 = vmatpush1.msra.mxu0 0.0
      %695 = vmatprep.subr.mxu0 0.0
      %696 = vmatpush1.msra.mxu0 0.0
      %697 = vmatprep.subr.mxu0 0.0
      %698 = vmatpush1.msra.mxu0 0.0
      %699 = vmatprep.subr.mxu0 0.0
      %700 = vmatpush1.msra.mxu0 0.0
      %701 = vmatprep.subr.mxu0 0.0
      %702 = vmatpush1.msra.mxu0 0.0
      %703 = vmatprep.subr.mxu0 0.0
      %704 = vmatpush1.msra.mxu0 0.0
      %705 = vmatprep.subr.mxu0 0.0
      %706 = vmatpush1.msra.mxu0 0.0
      %707 = vmatprep.mubr.f32.mxu0 0.0
      %v708 = vand.u32 %v227, 4294901760
      %709 = vmatmul.mubr.f32.gmra.mrb[0].mxu0 %v708
      %v710 = vpop.f32.mrb[0].mxu0
      %v711 = vadd.f32 %v636, %v710
      %v712 = vpop.f32.mrb[0].mxu0
      %713 = vdwg.mxu0
      %vm714 = vcmask 4096
      %v715 = vsel %vm714, %v711, -inf
      %v716 = vrot.slane %v715, 4
      %v717 = vmax.f32 %v715, %v716
      %v718 = vrot.slane %v717, 2
      %v719 = vmax.f32 %v717, %v718
      %v720 = vrot.slane %v719, 1
      %v721 = vmax.f32 %v719, %v720
      %v722 = vsub.f32 %v711, %v721
      %v723 = vmul.f32 %v722, 1.442695
      %v724 = vpow.pop %v723
      %v725 = vsel %vm714, %v724, 0.0
      %v726 = vrot.slane %v725, 4
      %v727 = vadd.f32 %v725, %v726
      %v728 = vrot.slane %v727, 2
      %v729 = vadd.f32 %v727, %v728
      %v730 = vrot.slane %v729, 1
      %v731 = vadd.f32 %v729, %v730
      %v732 = vrcp.pop %v731
      %v733 = vmul.f32 %v724, %v732
      %v734 = vld [vmem:[%s3] sm:$0xff]
      %v735 = vld [vmem:[%s3 + $0x8] sm:$0xff]
      %v736 = vld [vmem:[%s3 + $0x10] sm:$0xff]
      %v737 = vld [vmem:[%s3 + $0x18] sm:$0xff]
      %s739 = vtos %v733
      %v740 = vstv %s739
      %v742 = vmul.f32 %v740, %v734
      %v743 = vmul.f32 %v740, %v735
      %v744 = vmul.f32 %v740, %v736
      %v745 = vmul.f32 %v740, %v737
      %s746 = scalar_lea.vmem %s3, 32
      %v747 = vld [vmem:[%s746] sm:$0xff]
      %v748 = vld [vmem:[%s746 + $0x8] sm:$0xff]
      %v749 = vld [vmem:[%s746 + $0x10] sm:$0xff]
      %v750 = vld [vmem:[%s746 + $0x18] sm:$0xff]
      %v751 = vrot.slane %v733, 1
      %s752 = vtos %v751
      %v753 = vstv %s752
      %v755 = vmul.f32 %v753, %v747
      %v756 = vmul.f32 %v753, %v748
      %v757 = vmul.f32 %v753, %v749
      %v758 = vmul.f32 %v753, %v750
      %v759 = vadd.f32 %v742, %v755
      %v760 = vadd.f32 %v743, %v756
      %v761 = vadd.f32 %v744, %v757
      %v762 = vadd.f32 %v745, %v758
      %s763 = scalar_lea.vmem %s3, 64
      %v764 = vld [vmem:[%s763] sm:$0xff]
      %v765 = vld [vmem:[%s763 + $0x8] sm:$0xff]
      %v766 = vld [vmem:[%s763 + $0x10] sm:$0xff]
      %v767 = vld [vmem:[%s763 + $0x18] sm:$0xff]
      %v768 = vrot.slane %v733, 2
      %s769 = vtos %v768
      %v770 = vstv %s769
      %v772 = vmul.f32 %v770, %v764
      %v773 = vmul.f32 %v770, %v765
      %v774 = vmul.f32 %v770, %v766
      %v775 = vmul.f32 %v770, %v767
      %v776 = vadd.f32 %v759, %v772
      %v777 = vadd.f32 %v760, %v773
      %v778 = vadd.f32 %v761, %v774
      %v779 = vadd.f32 %v762, %v775
      %s780 = scalar_lea.vmem %s3, 96
      %v781 = vld [vmem:[%s780] sm:$0xff]
      %v782 = vld [vmem:[%s780 + $0x8] sm:$0xff]
      %v783 = vld [vmem:[%s780 + $0x10] sm:$0xff]
      %v784 = vld [vmem:[%s780 + $0x18] sm:$0xff]
      %v785 = vrot.slane %v733, 3
      %s786 = vtos %v785
      %v787 = vstv %s786
      %v789 = vmul.f32 %v787, %v781
      %v790 = vmul.f32 %v787, %v782
      %v791 = vmul.f32 %v787, %v783
      %v792 = vmul.f32 %v787, %v784
      %v793 = vadd.f32 %v776, %v789
      %v794 = vadd.f32 %v777, %v790
      %v795 = vadd.f32 %v778, %v791
      %v796 = vadd.f32 %v779, %v792
      %s797 = scalar_lea.vmem %s3, 128
      %v798 = vld [vmem:[%s797] sm:$0xff]
      %v799 = vld [vmem:[%s797 + $0x8] sm:$0xff]
      %v800 = vld [vmem:[%s797 + $0x10] sm:$0xff]
      %v801 = vld [vmem:[%s797 + $0x18] sm:$0xff]
      %v802 = vrot.slane %v733, 4
      %s803 = vtos %v802
      %v804 = vstv %s803
      %v806 = vmul.f32 %v804, %v798
      %v807 = vmul.f32 %v804, %v799
      %v808 = vmul.f32 %v804, %v800
      %v809 = vmul.f32 %v804, %v801
      %v810 = vadd.f32 %v793, %v806
      %v811 = vadd.f32 %v794, %v807
      %v812 = vadd.f32 %v795, %v808
      %v813 = vadd.f32 %v796, %v809
      %814 = vst [vmem:[%s197] sm:$0xff] %v810
      %815 = vst [vmem:[%s197 + $0x8] sm:$0xff] %v811
      %816 = vst [vmem:[%s197 + $0x10] sm:$0xff] %v812
      %817 = vst [vmem:[%s197 + $0x18] sm:$0xff] %v813
      %p818 = scmp.lt.s32.totalorder %s15, 1
      %s819 = scalar_select %p818, %s15, 1
      %s820 = smul.addr %s819, 4
      %s821 = smul.addr %s820, 8
      %s822 = scalar_lea.vmem %s4, %s821
      // Predicated region
      $region37: #{prompt_gen_block.1} parent=35 // pred_check
        %p823 = pneg %p122
      $region38: #{prompt_gen_block.1} parent=35 // pred_check_branch
        %825 = sbr.rel (%p823) target = $region40
      $region39: #{prompt_gen_block.1} parent=35 // pred_region
        _
      $region40: #{prompt_gen_block.1} parent=35 // pred_fallthru
        _
    $region36: #{prompt_gen_block.1} parent=5 // pred_fallthru
      _
    %p826 = scmp.le.s32.totalorder 2, %s10
    // Predicated region
    $region41: #{prompt_gen_block.1} parent=5 // pred_check
      %p827 = pneg %p826
    $region42: #{prompt_gen_block.1} parent=5 // pred_check_branch
      %829 = sbr.rel (%p827) target = $region44
    $region43: #{prompt_gen_block.1} parent=5 // pred_region
      %s830 = ssub.s32 %s10, 2
      // Predicated region
      $region45: #{prompt_gen_block.1} parent=43 // pred_check
        %p831 = pneg %p128
      $region46: #{prompt_gen_block.1} parent=43 // pred_check_branch
        %833 = sbr.rel (%p831) target = $region48
      $region47: #{prompt_gen_block.1} parent=43 // pred_region
        %p834 = scmp.lt.s32.totalorder %s16, 1
        %s835 = scalar_select %p834, %s16, 1
        %s836 = smul.addr %s835, 4
        %s837 = smul.addr %s836, 8
        %s838 = scalar_lea.vmem %s4, %s837
      $region48: #{prompt_gen_block.1} parent=43 // pred_fallthru
        _
    $region44: #{prompt_gen_block.1} parent=5 // pred_fallthru
      _
  $region6: #{prompt_gen_block.1} parent=0 // loop_footer
    %s14 = sadd.s32 1, %s10
  $region7: #{prompt_gen_block.1} parent=0 // loop_footer_branch
    %9 = sbr.rel target = $region3
  $region8: #{prompt_gen_block.1} parent=0 // loop_exit
    _

</llo_original>
